<compile_context>
chip_gen: v7x
topology: tpu7x:2x2x1
jax: 0.10.0
libtpu: 0.0.40
codegen_flags: <defaults>
</compile_context>

<pallas_src>
import functools

import numpy as np
import jax
import jax.numpy as jnp
from jax.experimental import pallas as pl
from jax.experimental.pallas import tpu as pltpu

LANE = 128
SUBLANE = 8


def _round_up(x, m):
    return ((x + m - 1) // m) * m


def actor_kernel(x_ref,
                 w1_ref, b1_ref,
                 w2_ref, b2_ref,
                 w3_ref, b3_ref,
                 w4_ref, b4_ref,
                 o_ref):
    """One batch tile of the MLP, entirely in VMEM.

    x_ref : (TB, in_pad)   bf16
    wN_ref: (d_in, d_out)  bf16   (transposed vs. torch nn.Linear)
    bN_ref: (1, d_out)     f32
    o_ref : (TB, out_pad)  f32    (lane-dense; padded lanes sliced off outside)
    """
    h = jnp.dot(x_ref[...], w1_ref[...],
                preferred_element_type=jnp.float32) + b1_ref[...]
    h = jnp.maximum(h, 0.0).astype(jnp.bfloat16)

    h = jnp.dot(h, w2_ref[...],
                preferred_element_type=jnp.float32) + b2_ref[...]
    h = jnp.maximum(h, 0.0).astype(jnp.bfloat16)

    h = jnp.dot(h, w3_ref[...],
                preferred_element_type=jnp.float32) + b3_ref[...]
    h = jnp.maximum(h, 0.0).astype(jnp.bfloat16)

    h = jnp.dot(h, w4_ref[...],
                preferred_element_type=jnp.float32) + b4_ref[...]
    o_ref[...] = jnp.tanh(h)


@functools.partial(jax.jit, static_argnames=("tile_b",))
def actor_forward(x, params, *, tile_b=256):
    """x: (B, input_size) f32.  params: dict with w1..w4 (in,out) and b1..b4 (1,out)."""
    B, in_features = x.shape
    out_features = params["w4"].shape[1]

    in_pad = _round_up(in_features, LANE)     # lane-dense x loads
    out_pad = _round_up(out_features, LANE)   # lane-dense (unmasked) out stores

    # Effective batch tile: cap at tile_b, never below the 8-sublane quantum;
    # pad the batch so the tile divides it evenly.
    tb = min(tile_b, _round_up(B, SUBLANE))
    b_pad = _round_up(B, tb)

    # bf16 at the kernel boundary (halves HBM traffic, MXU-native); zero-pad
    # the lane dims.  Padded rows/cols contribute exactly 0 to the f32 accum.
    xf = x.astype(jnp.bfloat16)
    if (b_pad, in_pad) != (B, in_features):
        xf = jnp.pad(xf, ((0, b_pad - B), (0, in_pad - in_features)))

    w1 = params["w1"].astype(jnp.bfloat16)
    if in_pad != in_features:
        w1 = jnp.pad(w1, ((0, in_pad - in_features), (0, 0)))
    w2 = params["w2"].astype(jnp.bfloat16)
    w3 = params["w3"].astype(jnp.bfloat16)
    w4 = params["w4"].astype(jnp.bfloat16)
    b4 = params["b4"].astype(jnp.float32)
    if out_pad != out_features:
        w4 = jnp.pad(w4, ((0, 0), (0, out_pad - out_features)))
        b4 = jnp.pad(b4, ((0, 0), (0, out_pad - out_features)))
    b1 = params["b1"].astype(jnp.float32)
    b2 = params["b2"].astype(jnp.float32)
    b3 = params["b3"].astype(jnp.float32)

    grid = (b_pad // tb,)

    def batch_tiled(i):          # x / out: advance along batch with the grid
        return (i, 0)

    def resident(i):             # weights / biases: same block every step
        return (0, 0)

    in_specs = [
        pl.BlockSpec((tb, in_pad), batch_tiled),
        pl.BlockSpec(w1.shape, resident),
        pl.BlockSpec(b1.shape, resident),
        pl.BlockSpec(w2.shape, resident),
        pl.BlockSpec(b2.shape, resident),
        pl.BlockSpec(w3.shape, resident),
        pl.BlockSpec(b3.shape, resident),
        pl.BlockSpec(w4.shape, resident),
        pl.BlockSpec(b4.shape, resident),
    ]
    out_specs = pl.BlockSpec((tb, out_pad), batch_tiled)

    out_padded = pl.pallas_call(
        actor_kernel,
        out_shape=jax.ShapeDtypeStruct((b_pad, out_pad), jnp.float32),
        grid=grid,
        in_specs=in_specs,
        out_specs=out_specs,
        compiler_params=pltpu.CompilerParams(
            dimension_semantics=("parallel",)),  # megacore sharding on v7x
    )(xf, w1, b1, w2, b2, w3, b3, w4, b4)

    return out_padded[:B, :out_features]


def init_params(key, input_size, output_size,
                fc1_size=128, fc2_size=64, fc3_size=32):
    """Deterministic init mirroring the PyTorch module's __init__.

    Weight uniform ranges match the module (1/sqrt(fan_out) for fc1-fc3,
    +-1e-3 for fc4).  Biases keep PyTorch's default nn.Linear init:
    U(-1/sqrt(fan_in), 1/sqrt(fan_in)).  Weights are stored transposed
    (in, out) so the kernel computes y = x @ W + b directly.
    """
    ks = jax.random.split(key, 8)

    def u(k, shape, bound):
        return jax.random.uniform(k, shape, jnp.float32, -bound, bound)

    stdv1 = 1.0 / np.sqrt(fc1_size)
    stdv2 = 1.0 / np.sqrt(fc2_size)
    stdv3 = 1.0 / np.sqrt(fc3_size)

    return {
        "w1": u(ks[0], (input_size, fc1_size), stdv1),
        "b1": u(ks[1], (1, fc1_size), 1.0 / np.sqrt(input_size)),
        "w2": u(ks[2], (fc1_size, fc2_size), stdv2),
        "b2": u(ks[3], (1, fc2_size), 1.0 / np.sqrt(fc1_size)),
        "w3": u(ks[4], (fc2_size, fc3_size), stdv3),
        "b3": u(ks[5], (1, fc3_size), 1.0 / np.sqrt(fc2_size)),
        "w4": u(ks[6], (fc3_size, output_size), 0.001),
        "b4": u(ks[7], (1, output_size), 1.0 / np.sqrt(fc3_size)),
    }


def reference_forward_bf16(x, p):
    """Pure-JAX reference with the same bf16-in / f32-accumulate recipe."""
    bf = jnp.bfloat16

    def layer(h, w, b):
        return jnp.dot(h.astype(bf), w.astype(bf),
                       preferred_element_type=jnp.float32) + b

    h = jnp.maximum(layer(x, p["w1"], p["b1"]), 0.0)
    h = jnp.maximum(layer(h, p["w2"], p["b2"]), 0.0)
    h = jnp.maximum(layer(h, p["w3"], p["b3"]), 0.0)
    return jnp.tanh(layer(h, p["w4"], p["b4"]))


def reference_forward_f32(x, p):
    """Full-f32 reference matching the original PyTorch module semantics."""
    h = jnp.maximum(x @ p["w1"] + p["b1"], 0.0)
    h = jnp.maximum(h @ p["w2"] + p["b2"], 0.0)
    h = jnp.maximum(h @ p["w3"] + p["b3"], 0.0)
    return jnp.tanh(h @ p["w4"] + p["b4"])


if __name__ == "__main__":
    key = jax.random.PRNGKey(0)
    k_obs, k_params = jax.random.split(key)

    batch = 64          # small test batch; tile_b=32 exercises a 2-step grid
    input_size = 24     # observation dim
    output_size = 4     # action dim

    params = init_params(k_params, input_size, output_size)
    obs = jax.random.normal(k_obs, (batch, input_size), dtype=jnp.float32)

    out = actor_forward(obs, params, tile_b=32)
    out = jax.block_until_ready(out)
    assert out.shape == (batch, output_size)

    # Tight check vs. a pure-JAX reference using the identical bf16 recipe.
    ref_bf16 = reference_forward_bf16(obs, params)
    np.testing.assert_allclose(np.asarray(out), np.asarray(ref_bf16),
                               rtol=1e-3, atol=1e-4)

    # Looser sanity check vs. the exact f32 PyTorch-equivalent forward.
    ref_f32 = reference_forward_f32(obs, params)
    np.testing.assert_allclose(np.asarray(out), np.asarray(ref_f32),
                               rtol=5e-2, atol=5e-3)

    print("KERNEL_OK")
</pallas_src>

<mosaic_0001>
module attributes {stable_mosaic.version = 11 : i64} {
  func.func @actor_kernel(%arg0: i32, %arg1: memref<32x128xbf16, #tpu.memory_space<vmem>>, %arg2: memref<128x128xbf16, #tpu.memory_space<vmem>>, %arg3: memref<1x128xf32, #tpu.memory_space<vmem>>, %arg4: memref<128x64xbf16, #tpu.memory_space<vmem>>, %arg5: memref<1x64xf32, #tpu.memory_space<vmem>>, %arg6: memref<64x32xbf16, #tpu.memory_space<vmem>>, %arg7: memref<1x32xf32, #tpu.memory_space<vmem>>, %arg8: memref<32x128xbf16, #tpu.memory_space<vmem>>, %arg9: memref<1x128xf32, #tpu.memory_space<vmem>>, %arg10: memref<32x128xf32, #tpu.memory_space<vmem>>) attributes {dimension_semantics = [#tpu.dimension_semantics<parallel>], iteration_bounds = array<i64: 2>, scalar_prefetch = 0 : i64, scratch_operands = 0 : i64, tpu.core_type = #tpu.core_type<tc>, window_params = [{transform_indices = @transform_0, window_bounds = array<i64: 32, 128>}, {pipeline_mode = #tpu.pipeline_mode<synchronous>, transform_indices = @transform_1, window_bounds = array<i64: 128, 128>}, {pipeline_mode = #tpu.pipeline_mode<synchronous>, transform_indices = @transform_2, window_bounds = array<i64: 1, 128>}, {pipeline_mode = #tpu.pipeline_mode<synchronous>, transform_indices = @transform_3, window_bounds = array<i64: 128, 64>}, {pipeline_mode = #tpu.pipeline_mode<synchronous>, transform_indices = @transform_4, window_bounds = array<i64: 1, 64>}, {pipeline_mode = #tpu.pipeline_mode<synchronous>, transform_indices = @transform_5, window_bounds = array<i64: 64, 32>}, {pipeline_mode = #tpu.pipeline_mode<synchronous>, transform_indices = @transform_6, window_bounds = array<i64: 1, 32>}, {pipeline_mode = #tpu.pipeline_mode<synchronous>, transform_indices = @transform_7, window_bounds = array<i64: 32, 128>}, {pipeline_mode = #tpu.pipeline_mode<synchronous>, transform_indices = @transform_8, window_bounds = array<i64: 1, 128>}, {transform_indices = @transform_9, window_bounds = array<i64: 32, 128>}]} {
    %c0 = arith.constant 0 : index
    %c0_0 = arith.constant 0 : index
    %0 = vector.load %arg1[%c0, %c0_0] : memref<32x128xbf16, #tpu.memory_space<vmem>>, vector<32x128xbf16>
    %c0_1 = arith.constant 0 : index
    %c0_2 = arith.constant 0 : index
    %1 = vector.load %arg2[%c0_1, %c0_2] : memref<128x128xbf16, #tpu.memory_space<vmem>>, vector<128x128xbf16>
    %cst = arith.constant dense<0.000000e+00> : vector<32x128xf32>
    %2 = tpu.matmul %0, %1, %cst {dimension_numbers = #tpu.dot_dimension_numbers<[1], [0], [0], [1], [0, 0, 1, 1], [], []>} : vector<32x128xbf16>, vector<128x128xbf16>, vector<32x128xf32> -> vector<32x128xf32>
    %c0_3 = arith.constant 0 : index
    %c0_4 = arith.constant 0 : index
    %3 = vector.load %arg3[%c0_3, %c0_4] : memref<1x128xf32, #tpu.memory_space<vmem>>, vector<1x128xf32>
    %4 = vector.broadcast %3 : vector<1x128xf32> to vector<32x128xf32>
    %5 = arith.addf %2, %4 : vector<32x128xf32>
    %cst_5 = arith.constant 0.000000e+00 : f32
    %6 = vector.broadcast %cst_5 : f32 to vector<32x128xf32>
    %7 = arith.maximumf %5, %6 : vector<32x128xf32>
    %8 = arith.truncf %7 : vector<32x128xf32> to vector<32x128xbf16>
    %c0_6 = arith.constant 0 : index
    %c0_7 = arith.constant 0 : index
    %9 = vector.load %arg4[%c0_6, %c0_7] : memref<128x64xbf16, #tpu.memory_space<vmem>>, vector<128x64xbf16>
    %cst_8 = arith.constant dense<0.000000e+00> : vector<32x64xf32>
    %10 = tpu.matmul %8, %9, %cst_8 {dimension_numbers = #tpu.dot_dimension_numbers<[1], [0], [0], [1], [0, 0, 1, 1], [], []>} : vector<32x128xbf16>, vector<128x64xbf16>, vector<32x64xf32> -> vector<32x64xf32>
    %c0_9 = arith.constant 0 : index
    %c0_10 = arith.constant 0 : index
    %11 = vector.load %arg5[%c0_9, %c0_10] : memref<1x64xf32, #tpu.memory_space<vmem>>, vector<1x64xf32>
    %12 = vector.broadcast %11 : vector<1x64xf32> to vector<32x64xf32>
    %13 = arith.addf %10, %12 : vector<32x64xf32>
    %cst_11 = arith.constant 0.000000e+00 : f32
    %14 = vector.broadcast %cst_11 : f32 to vector<32x64xf32>
    %15 = arith.maximumf %13, %14 : vector<32x64xf32>
    %16 = arith.truncf %15 : vector<32x64xf32> to vector<32x64xbf16>
    %c0_12 = arith.constant 0 : index
    %c0_13 = arith.constant 0 : index
    %17 = vector.load %arg6[%c0_12, %c0_13] : memref<64x32xbf16, #tpu.memory_space<vmem>>, vector<64x32xbf16>
    %cst_14 = arith.constant dense<0.000000e+00> : vector<32x32xf32>
    %18 = tpu.matmul %16, %17, %cst_14 {dimension_numbers = #tpu.dot_dimension_numbers<[1], [0], [0], [1], [0, 0, 1, 1], [], []>} : vector<32x64xbf16>, vector<64x32xbf16>, vector<32x32xf32> -> vector<32x32xf32>
    %c0_15 = arith.constant 0 : index
    %c0_16 = arith.constant 0 : index
    %19 = vector.load %arg7[%c0_15, %c0_16] : memref<1x32xf32, #tpu.memory_space<vmem>>, vector<1x32xf32>
    %20 = vector.broadcast %19 : vector<1x32xf32> to vector<32x32xf32>
    %21 = arith.addf %18, %20 : vector<32x32xf32>
    %cst_17 = arith.constant 0.000000e+00 : f32
    %22 = vector.broadcast %cst_17 : f32 to vector<32x32xf32>
    %23 = arith.maximumf %21, %22 : vector<32x32xf32>
    %24 = arith.truncf %23 : vector<32x32xf32> to vector<32x32xbf16>
    %c0_18 = arith.constant 0 : index
    %c0_19 = arith.constant 0 : index
    %25 = vector.load %arg8[%c0_18, %c0_19] : memref<32x128xbf16, #tpu.memory_space<vmem>>, vector<32x128xbf16>
    %cst_20 = arith.constant dense<0.000000e+00> : vector<32x128xf32>
    %26 = tpu.matmul %24, %25, %cst_20 {dimension_numbers = #tpu.dot_dimension_numbers<[1], [0], [0], [1], [0, 0, 1, 1], [], []>} : vector<32x32xbf16>, vector<32x128xbf16>, vector<32x128xf32> -> vector<32x128xf32>
    %c0_21 = arith.constant 0 : index
    %c0_22 = arith.constant 0 : index
    %27 = vector.load %arg9[%c0_21, %c0_22] : memref<1x128xf32, #tpu.memory_space<vmem>>, vector<1x128xf32>
    %28 = vector.broadcast %27 : vector<1x128xf32> to vector<32x128xf32>
    %29 = arith.addf %26, %28 : vector<32x128xf32>
    %30 = math.tanh %29 : vector<32x128xf32>
    %c0_23 = arith.constant 0 : index
    %c0_24 = arith.constant 0 : index
    %31 = vector.load %arg10[%c0_23, %c0_24] : memref<32x128xf32, #tpu.memory_space<vmem>>, vector<32x128xf32>
    tpu.vector_store %arg10[%c0_23, %c0_24], %30 {strides = array<i32>} : memref<32x128xf32, #tpu.memory_space<vmem>>, vector<32x128xf32>,
    return
  }
  func.func @transform_0(%arg0: i32) -> (i32, i32) {
    %c0_i32 = arith.constant 0 : i32
    %c0_i32_0 = arith.constant 0 : i32
    return %arg0, %c0_i32 : i32, i32
  }
  func.func @transform_1(%arg0: i32) -> (i32, i32) {
    %c0_i32 = arith.constant 0 : i32
    %c0_i32_0 = arith.constant 0 : i32
    %c0_i32_1 = arith.constant 0 : i32
    return %c0_i32, %c0_i32_0 : i32, i32
  }
  func.func @transform_2(%arg0: i32) -> (i32, i32) {
    %c0_i32 = arith.constant 0 : i32
    %c0_i32_0 = arith.constant 0 : i32
    %c0_i32_1 = arith.constant 0 : i32
    return %c0_i32, %c0_i32_0 : i32, i32
  }
  func.func @transform_3(%arg0: i32) -> (i32, i32) {
    %c0_i32 = arith.constant 0 : i32
    %c0_i32_0 = arith.constant 0 : i32
    %c0_i32_1 = arith.constant 0 : i32
    return %c0_i32, %c0_i32_0 : i32, i32
  }
  func.func @transform_4(%arg0: i32) -> (i32, i32) {
    %c0_i32 = arith.constant 0 : i32
    %c0_i32_0 = arith.constant 0 : i32
    %c0_i32_1 = arith.constant 0 : i32
    return %c0_i32, %c0_i32_0 : i32, i32
  }
  func.func @transform_5(%arg0: i32) -> (i32, i32) {
    %c0_i32 = arith.constant 0 : i32
    %c0_i32_0 = arith.constant 0 : i32
    %c0_i32_1 = arith.constant 0 : i32
    return %c0_i32, %c0_i32_0 : i32, i32
  }
  func.func @transform_6(%arg0: i32) -> (i32, i32) {
    %c0_i32 = arith.constant 0 : i32
    %c0_i32_0 = arith.constant 0 : i32
    %c0_i32_1 = arith.constant 0 : i32
    return %c0_i32, %c0_i32_0 : i32, i32
  }
  func.func @transform_7(%arg0: i32) -> (i32, i32) {
    %c0_i32 = arith.constant 0 : i32
    %c0_i32_0 = arith.constant 0 : i32
    %c0_i32_1 = arith.constant 0 : i32
    return %c0_i32, %c0_i32_0 : i32, i32
  }
  func.func @transform_8(%arg0: i32) -> (i32, i32) {
    %c0_i32 = arith.constant 0 : i32
    %c0_i32_0 = arith.constant 0 : i32
    %c0_i32_1 = arith.constant 0 : i32
    return %c0_i32, %c0_i32_0 : i32, i32
  }
  func.func @transform_9(%arg0: i32) -> (i32, i32) {
    %c0_i32 = arith.constant 0 : i32
    %c0_i32_0 = arith.constant 0 : i32
    return %arg0, %c0_i32 : i32, i32
  }
}

</mosaic_0001>

<llo_original>
// kernel: actor_forward.1
$region0: #{actor_forward.1}
  #allocation0 [shape = 'u32[]', space=smem, size = 0x4, offset = 0x4, fixed_abs, tag = 'smem constant byte address 0x4 - core index']
  #allocation1 [shape = 'u32[144,128]{1,0:T(1,128)}', space=vmem, size = 0x12000, scoped, tag = 'internal scratch']
  %s0 = inlined_call_operand.vmem [shape: bf16[64,128], index: 0, kind: input, shape index: {}]
  %s1 = inlined_call_operand.vmem [shape: bf16[128,128], index: 1, kind: input, shape index: {}]
  %s2 = inlined_call_operand.vmem [shape: f32[1,128], index: 2, kind: input, shape index: {}]
  %s3 = inlined_call_operand.vmem [shape: bf16[128,64], index: 3, kind: input, shape index: {}]
  %s4 = inlined_call_operand.vmem [shape: f32[1,64], index: 4, kind: input, shape index: {}]
  %s5 = inlined_call_operand.vmem [shape: bf16[64,32], index: 5, kind: input, shape index: {}]
  %s6 = inlined_call_operand.vmem [shape: f32[1,32], index: 6, kind: input, shape index: {}]
  %s7 = inlined_call_operand.vmem [shape: bf16[32,128], index: 7, kind: input, shape index: {}]
  %s8 = inlined_call_operand.vmem [shape: f32[1,128], index: 8, kind: input, shape index: {}]
  %s9 = inlined_call_operand.vmem [shape: f32[64,128], index: 9, kind: output, shape index: {}]
  %s10 = sld [smem:[#allocation0]]
  $region69: #{actor_forward.1} parent=0
    _
  %s12 = ssub.s32 1, %s10
  %s13 = scalar_select 0, %s12, %s10
  loop: start=0, step=1, limit=4
  $region2: #{actor_forward.1} parent=0 // loop_pre_header
    _
  $region3: #{actor_forward.1} parent=0 // loop_header
    %s15 = sphi 0, %s19
    %p16 = scmp.ge.s32.totalorder %s15, 4
    %s25 = sphi 0, %s27
    %s28 = sphi 0, %s25
    %s29 = sphi 0, %s28
    %s45 = sphi 0, %s29
    %s49 = sphi 0, %s49
    %s51 = sphi 0, %s49
    %s52 = sphi 0, %s51
    %s66 = sphi 0, %s52
    %s70 = sphi 0, %s70
    %s72 = sphi 0, %s70
    %s73 = sphi 0, %s72
    %s87 = sphi 0, %s73
    %s91 = sphi 0, %s91
    %s93 = sphi 0, %s91
    %s94 = sphi 0, %s93
    %s108 = sphi 0, %s94
    %s112 = sphi 0, %s112
    %s114 = sphi 0, %s112
    %s115 = sphi 0, %s114
    %s129 = sphi 0, %s115
    %s133 = sphi 0, %s133
    %s135 = sphi 0, %s133
    %s136 = sphi 0, %s135
    %s150 = sphi 0, %s136
    %s154 = sphi 0, %s154
    %s156 = sphi 0, %s154
    %s157 = sphi 0, %s156
    %s171 = sphi 0, %s157
    %s175 = sphi 0, %s175
    %s177 = sphi 0, %s175
    %s178 = sphi 0, %s177
    %s192 = sphi 0, %s178
    %s196 = sphi 0, %s196
    %s198 = sphi 0, %s196
    %s199 = sphi 0, %s198
    %s213 = sphi 0, %s199
    %s219 = sphi 0, %s221
    %s222 = sphi 0, %s219
    %s223 = sphi 0, %s222
    %s239 = sphi 0, %s223
  $region4: #{actor_forward.1} parent=0 // loop_header_branch
    %18 = sbr.rel (%p16) target = $region8
  $region5: #{actor_forward.1} parent=0 // loop_body
    %s20 = ssub.s32 %s15, 1
    %s21 = ssub.s32 %s15, 2
    %s22 = sadd.s32 %s15, 1
    %s23 = ssub.s32 %s15, %s22
    %p24 = scmp.eq.s32.totalorder %s23, 0
    %s26 = sadd.s32 %s25, 1
    %s27 = scalar_select %p24, %s25, %s26
    %p30 = pneg %p24
    %p31 = scmp.eq.s32.totalorder %s15, 1
    %p32 = por %p30, %p31
    %p33 = scmp.ne.s32.totalorder %s25, %s28
    %p34 = scmp.eq.s32.totalorder %s15, 0
    %p35 = por %p33, %p34
    %p36 = scmp.ne.s32.totalorder %s25, %s28
    %p37 = scmp.eq.s32.totalorder %s20, 1
    %p38 = por %p36, %p37
    %p39 = scmp.ne.s32.totalorder %s28, %s29
    %p40 = scmp.eq.s32.totalorder %s20, 0
    %p41 = por %p39, %p40
    %p42 = scmp.ne.s32.totalorder %s28, %s29
    %p43 = scmp.eq.s32.totalorder %s21, 1
    %p44 = por %p42, %p43
    %p46 = scmp.ne.s32.totalorder %s29, %s45
    %p47 = scmp.eq.s32.totalorder %s21, 0
    %p48 = por %p46, %p47
    %s50 = sadd.s32 %s49, 1
    %p53 = scmp.eq.s32.totalorder %s15, 1
    %p54 = scmp.ne.s32.totalorder %s49, %s51
    %p55 = scmp.eq.s32.totalorder %s15, 0
    %p56 = por %p54, %p55
    %p57 = scmp.ne.s32.totalorder %s49, %s51
    %p58 = scmp.eq.s32.totalorder %s20, 1
    %p59 = por %p57, %p58
    %p60 = scmp.ne.s32.totalorder %s51, %s52
    %p61 = scmp.eq.s32.totalorder %s20, 0
    %p62 = por %p60, %p61
    %p63 = scmp.ne.s32.totalorder %s51, %s52
    %p64 = scmp.eq.s32.totalorder %s21, 1
    %p65 = por %p63, %p64
    %p67 = scmp.ne.s32.totalorder %s52, %s66
    %p68 = scmp.eq.s32.totalorder %s21, 0
    %p69 = por %p67, %p68
    %s71 = sadd.s32 %s70, 1
    %p74 = scmp.eq.s32.totalorder %s15, 1
    %p75 = scmp.ne.s32.totalorder %s70, %s72
    %p76 = scmp.eq.s32.totalorder %s15, 0
    %p77 = por %p75, %p76
    %p78 = scmp.ne.s32.totalorder %s70, %s72
    %p79 = scmp.eq.s32.totalorder %s20, 1
    %p80 = por %p78, %p79
    %p81 = scmp.ne.s32.totalorder %s72, %s73
    %p82 = scmp.eq.s32.totalorder %s20, 0
    %p83 = por %p81, %p82
    %p84 = scmp.ne.s32.totalorder %s72, %s73
    %p85 = scmp.eq.s32.totalorder %s21, 1
    %p86 = por %p84, %p85
    %p88 = scmp.ne.s32.totalorder %s73, %s87
    %p89 = scmp.eq.s32.totalorder %s21, 0
    %p90 = por %p88, %p89
    %s92 = sadd.s32 %s91, 1
    %p95 = scmp.eq.s32.totalorder %s15, 1
    %p96 = scmp.ne.s32.totalorder %s91, %s93
    %p97 = scmp.eq.s32.totalorder %s15, 0
    %p98 = por %p96, %p97
    %p99 = scmp.ne.s32.totalorder %s91, %s93
    %p100 = scmp.eq.s32.totalorder %s20, 1
    %p101 = por %p99, %p100
    %p102 = scmp.ne.s32.totalorder %s93, %s94
    %p103 = scmp.eq.s32.totalorder %s20, 0
    %p104 = por %p102, %p103
    %p105 = scmp.ne.s32.totalorder %s93, %s94
    %p106 = scmp.eq.s32.totalorder %s21, 1
    %p107 = por %p105, %p106
    %p109 = scmp.ne.s32.totalorder %s94, %s108
    %p110 = scmp.eq.s32.totalorder %s21, 0
    %p111 = por %p109, %p110
    %s113 = sadd.s32 %s112, 1
    %p116 = scmp.eq.s32.totalorder %s15, 1
    %p117 = scmp.ne.s32.totalorder %s112, %s114
    %p118 = scmp.eq.s32.totalorder %s15, 0
    %p119 = por %p117, %p118
    %p120 = scmp.ne.s32.totalorder %s112, %s114
    %p121 = scmp.eq.s32.totalorder %s20, 1
    %p122 = por %p120, %p121
    %p123 = scmp.ne.s32.totalorder %s114, %s115
    %p124 = scmp.eq.s32.totalorder %s20, 0
    %p125 = por %p123, %p124
    %p126 = scmp.ne.s32.totalorder %s114, %s115
    %p127 = scmp.eq.s32.totalorder %s21, 1
    %p128 = por %p126, %p127
    %p130 = scmp.ne.s32.totalorder %s115, %s129
    %p131 = scmp.eq.s32.totalorder %s21, 0
    %p132 = por %p130, %p131
    %s134 = sadd.s32 %s133, 1
    %p137 = scmp.eq.s32.totalorder %s15, 1
    %p138 = scmp.ne.s32.totalorder %s133, %s135
    %p139 = scmp.eq.s32.totalorder %s15, 0
    %p140 = por %p138, %p139
    %p141 = scmp.ne.s32.totalorder %s133, %s135
    %p142 = scmp.eq.s32.totalorder %s20, 1
    %p143 = por %p141, %p142
    %p144 = scmp.ne.s32.totalorder %s135, %s136
    %p145 = scmp.eq.s32.totalorder %s20, 0
    %p146 = por %p144, %p145
    %p147 = scmp.ne.s32.totalorder %s135, %s136
    %p148 = scmp.eq.s32.totalorder %s21, 1
    %p149 = por %p147, %p148
    %p151 = scmp.ne.s32.totalorder %s136, %s150
    %p152 = scmp.eq.s32.totalorder %s21, 0
    %p153 = por %p151, %p152
    %s155 = sadd.s32 %s154, 1
    %p158 = scmp.eq.s32.totalorder %s15, 1
    %p159 = scmp.ne.s32.totalorder %s154, %s156
    %p160 = scmp.eq.s32.totalorder %s15, 0
    %p161 = por %p159, %p160
    %p162 = scmp.ne.s32.totalorder %s154, %s156
    %p163 = scmp.eq.s32.totalorder %s20, 1
    %p164 = por %p162, %p163
    %p165 = scmp.ne.s32.totalorder %s156, %s157
    %p166 = scmp.eq.s32.totalorder %s20, 0
    %p167 = por %p165, %p166
    %p168 = scmp.ne.s32.totalorder %s156, %s157
    %p169 = scmp.eq.s32.totalorder %s21, 1
    %p170 = por %p168, %p169
    %p172 = scmp.ne.s32.totalorder %s157, %s171
    %p173 = scmp.eq.s32.totalorder %s21, 0
    %p174 = por %p172, %p173
    %s176 = sadd.s32 %s175, 1
    %p179 = scmp.eq.s32.totalorder %s15, 1
    %p180 = scmp.ne.s32.totalorder %s175, %s177
    %p181 = scmp.eq.s32.totalorder %s15, 0
    %p182 = por %p180, %p181
    %p183 = scmp.ne.s32.totalorder %s175, %s177
    %p184 = scmp.eq.s32.totalorder %s20, 1
    %p185 = por %p183, %p184
    %p186 = scmp.ne.s32.totalorder %s177, %s178
    %p187 = scmp.eq.s32.totalorder %s20, 0
    %p188 = por %p186, %p187
    %p189 = scmp.ne.s32.totalorder %s177, %s178
    %p190 = scmp.eq.s32.totalorder %s21, 1
    %p191 = por %p189, %p190
    %p193 = scmp.ne.s32.totalorder %s178, %s192
    %p194 = scmp.eq.s32.totalorder %s21, 0
    %p195 = por %p193, %p194
    %s197 = sadd.s32 %s196, 1
    %p200 = scmp.eq.s32.totalorder %s15, 1
    %p201 = scmp.ne.s32.totalorder %s196, %s198
    %p202 = scmp.eq.s32.totalorder %s15, 0
    %p203 = por %p201, %p202
    %p204 = scmp.ne.s32.totalorder %s196, %s198
    %p205 = scmp.eq.s32.totalorder %s20, 1
    %p206 = por %p204, %p205
    %p207 = scmp.ne.s32.totalorder %s198, %s199
    %p208 = scmp.eq.s32.totalorder %s20, 0
    %p209 = por %p207, %p208
    %p210 = scmp.ne.s32.totalorder %s198, %s199
    %p211 = scmp.eq.s32.totalorder %s21, 1
    %p212 = por %p210, %p211
    %p214 = scmp.ne.s32.totalorder %s199, %s213
    %p215 = scmp.eq.s32.totalorder %s21, 0
    %p216 = por %p214, %p215
    %s217 = ssub.s32 %s15, %s22
    %p218 = scmp.eq.s32.totalorder %s217, 0
    %s220 = sadd.s32 %s219, 1
    %s221 = scalar_select %p218, %s219, %s220
    %p224 = pneg %p218
    %p225 = scmp.eq.s32.totalorder %s15, 1
    %p226 = por %p224, %p225
    %p227 = scmp.ne.s32.totalorder %s219, %s222
    %p228 = scmp.eq.s32.totalorder %s15, 0
    %p229 = por %p227, %p228
    %p230 = scmp.ne.s32.totalorder %s219, %s222
    %p231 = scmp.eq.s32.totalorder %s20, 1
    %p232 = por %p230, %p231
    %p233 = scmp.ne.s32.totalorder %s222, %s223
    %p234 = scmp.eq.s32.totalorder %s20, 0
    %p235 = por %p233, %p234
    %p236 = scmp.ne.s32.totalorder %s222, %s223
    %p237 = scmp.eq.s32.totalorder %s21, 1
    %p238 = por %p236, %p237
    %p240 = scmp.ne.s32.totalorder %s223, %s239
    %p241 = scmp.eq.s32.totalorder %s21, 0
    %p242 = por %p240, %p241
    %p243 = scmp.le.s32.totalorder 1, %s15
    %p244 = scmp.lt.s32.totalorder %s15, 3
    %p245 = pnand %p243, %p244
    %p246 = pneg %p245
    // Predicated region
    $region9: #{actor_forward.1} parent=5 // pred_check
      _
    $region10: #{actor_forward.1} parent=5 // pred_check_branch
      %248 = sbr.rel (%p245) target = $region12
    $region11: #{actor_forward.1} parent=5 // pred_region
      %s249 = ssub.s32 %s15, 1
      // Predicated region
      $region13: #{actor_forward.1} parent=11 // pred_check
        %p250 = pneg %p62
      $region14: #{actor_forward.1} parent=11 // pred_check_branch
        %252 = sbr.rel (%p250) target = $region16
      $region15: #{actor_forward.1} parent=11 // pred_region
        _
      $region16: #{actor_forward.1} parent=11 // pred_fallthru
        _
      // Predicated region
      $region17: #{actor_forward.1} parent=11 // pred_check
        %p253 = pneg %p83
      $region18: #{actor_forward.1} parent=11 // pred_check_branch
        %255 = sbr.rel (%p253) target = $region20
      $region19: #{actor_forward.1} parent=11 // pred_region
        _
      $region20: #{actor_forward.1} parent=11 // pred_fallthru
        _
      // Predicated region
      $region21: #{actor_forward.1} parent=11 // pred_check
        %p256 = pneg %p104
      $region22: #{actor_forward.1} parent=11 // pred_check_branch
        %258 = sbr.rel (%p256) target = $region24
      $region23: #{actor_forward.1} parent=11 // pred_region
        _
      $region24: #{actor_forward.1} parent=11 // pred_fallthru
        _
      // Predicated region
      $region25: #{actor_forward.1} parent=11 // pred_check
        %p259 = pneg %p125
      $region26: #{actor_forward.1} parent=11 // pred_check_branch
        %261 = sbr.rel (%p259) target = $region28
      $region27: #{actor_forward.1} parent=11 // pred_region
        _
      $region28: #{actor_forward.1} parent=11 // pred_fallthru
        _
      // Predicated region
      $region29: #{actor_forward.1} parent=11 // pred_check
        %p262 = pneg %p146
      $region30: #{actor_forward.1} parent=11 // pred_check_branch
        %264 = sbr.rel (%p262) target = $region32
      $region31: #{actor_forward.1} parent=11 // pred_region
        _
      $region32: #{actor_forward.1} parent=11 // pred_fallthru
        _
      // Predicated region
      $region33: #{actor_forward.1} parent=11 // pred_check
        %p265 = pneg %p167
      $region34: #{actor_forward.1} parent=11 // pred_check_branch
        %267 = sbr.rel (%p265) target = $region36
      $region35: #{actor_forward.1} parent=11 // pred_region
        _
      $region36: #{actor_forward.1} parent=11 // pred_fallthru
        _
      // Predicated region
      $region37: #{actor_forward.1} parent=11 // pred_check
        %p268 = pneg %p188
      $region38: #{actor_forward.1} parent=11 // pred_check_branch
        %270 = sbr.rel (%p268) target = $region40
      $region39: #{actor_forward.1} parent=11 // pred_region
        _
      $region40: #{actor_forward.1} parent=11 // pred_fallthru
        _
      // Predicated region
      $region41: #{actor_forward.1} parent=11 // pred_check
        %p271 = pneg %p209
      $region42: #{actor_forward.1} parent=11 // pred_check_branch
        %273 = sbr.rel (%p271) target = $region44
      $region43: #{actor_forward.1} parent=11 // pred_region
        _
      $region44: #{actor_forward.1} parent=11 // pred_fallthru
        _
    $region12: #{actor_forward.1} parent=5 // pred_fallthru
      _
    %p274 = scmp.lt.s32.totalorder %s15, 2
    // Predicated region
    $region45: #{actor_forward.1} parent=5 // pred_check
      %p275 = pneg %p274
    $region46: #{actor_forward.1} parent=5 // pred_check_branch
      %277 = sbr.rel (%p275) target = $region48
    $region47: #{actor_forward.1} parent=5 // pred_region
      // Predicated region
      $region49: #{actor_forward.1} parent=47 // pred_check
        %p278 = pneg %p35
      $region50: #{actor_forward.1} parent=47 // pred_check_branch
        %280 = sbr.rel (%p278) target = $region52
      $region51: #{actor_forward.1} parent=47 // pred_region
        %s281 = smul.u32 4, %s15
        %p282 = scmp.lt.s32.totalorder %s281, 7
        %s283 = scalar_select %p282, %s281, 7
        %s284 = smul.addr %s283, 4
        %s285 = scalar_lea.vmem %s0, %s284
        %s286 = smul.u32 4, %s15
      $region52: #{actor_forward.1} parent=47 // pred_fallthru
        _
    $region48: #{actor_forward.1} parent=5 // pred_fallthru
      _
    %p287 = scmp.le.s32.totalorder 1, %s15
    %p288 = scmp.lt.s32.totalorder %s15, 3
    %p289 = pnand %p287, %p288
    %p290 = pneg %p289
    // Predicated region
    $region53: #{actor_forward.1} parent=5 // pred_check
      _
    $region54: #{actor_forward.1} parent=5 // pred_check_branch
      %292 = sbr.rel (%p289) target = $region56
    $region55: #{actor_forward.1} parent=5 // pred_region
      %s293 = ssub.s32 %s15, 1
      %s294 = smul.u32 4, %s20
      %p295 = scmp.lt.s32.totalorder %s294, 7
      %s296 = scalar_select %p295, %s294, 7
      %s297 = smul.addr %s296, 4
      %s298 = scalar_lea.vmem %s0, %s297
      %p299 = pneg %p41
      %p300 = pneg %p38
      %p301 = pneg %p62
      %p302 = pneg %p59
      %p303 = pneg %p83
      %p304 = pneg %p80
      %p305 = pneg %p104
      %p306 = pneg %p101
      %p307 = pneg %p125
      %p308 = pneg %p122
      %p309 = pneg %p146
      %p310 = pneg %p143
      %p311 = pneg %p167
      %p312 = pneg %p164
      %p313 = pneg %p188
      %p314 = pneg %p185
      %p315 = pneg %p209
      %p316 = pneg %p206
      %p317 = pneg %p235
      %p318 = pneg %p232
      %s319 = smul.u32 4, %s20
      %p320 = scmp.lt.s32.totalorder %s319, 7
      %s321 = scalar_select %p320, %s319, 7
      %s322 = smul.addr %s321, 8
      %s323 = scalar_lea.vmem %s9, %s322
      %s324 = smul.u32 4, %s20
      %p325 = scmp.lt.s32.totalorder %s324, 7
      %s326 = scalar_select %p325, %s324, 7
      %s327 = smul.addr %s326, 4
      %s328 = scalar_lea.vmem %s0, %s327
      %s329 = smul.u32 4, %s20
      %s330 = smul.u32 4, %s20
      %p331 = scmp.lt.s32.totalorder %s330, 7
      %s332 = scalar_select %p331, %s330, 7
      %s333 = smul.addr %s332, 8
      %s334 = scalar_lea.vmem %s9, %s333
      %s335 = smul.u32 4, %s20
      %v337 = vld [vmem:[%s328] sm:$0xf]
      %v338 = vld [vmem:[%s328 + $0x4] sm:$0xf]
      %v339 = vld [vmem:[%s328 + $0x8] sm:$0xf]
      %v340 = vld [vmem:[%s328 + $0xc] sm:$0xf]
      %v341 = vld [vmem:[%s1] sm:$0xf]
      %v342 = vld [vmem:[%s1 + $0x4] sm:$0xf]
      %v343 = vld [vmem:[%s1 + $0x8] sm:$0xf]
      %v344 = vld [vmem:[%s1 + $0xc] sm:$0xf]
      %v345 = vld [vmem:[%s1 + $0x10] sm:$0xf]
      %v346 = vld [vmem:[%s1 + $0x14] sm:$0xf]
      %v347 = vld [vmem:[%s1 + $0x18] sm:$0xf]
      %v348 = vld [vmem:[%s1 + $0x1c] sm:$0xf]
      %v349 = vld [vmem:[%s1 + $0x20] sm:$0xf]
      %v350 = vld [vmem:[%s1 + $0x24] sm:$0xf]
      %v351 = vld [vmem:[%s1 + $0x28] sm:$0xf]
      %v352 = vld [vmem:[%s1 + $0x2c] sm:$0xf]
      %v353 = vld [vmem:[%s1 + $0x30] sm:$0xf]
      %v354 = vld [vmem:[%s1 + $0x34] sm:$0xf]
      %v355 = vld [vmem:[%s1 + $0x38] sm:$0xf]
      %v356 = vld [vmem:[%s1 + $0x3c] sm:$0xf]
      %v357 = vld [vmem:[%s2] sm:$0x1]
      %v359 = vlaneseq
      %v360 = vshrl.u32 %v359, 7
      %v361 = vsub.s32 0, %v360
      %v362 = vrot.slane %v357, %v361
      %v368 = vunpack.c.l.b16 %v337
      %v369 = vunpack.c.l.b16 %v338
      %v370 = vunpack.c.l.b16 %v339
      %v371 = vunpack.c.l.b16 %v340
      %v372 = vpack.c.b16 %v369, %v368
      %v373 = vpack.c.b16 %v371, %v370
      %v392 = vunpack.c.l.b16 %v341
      %v393 = vunpack.c.l.b16 %v342
      %v394 = vunpack.c.l.b16 %v343
      %v395 = vunpack.c.l.b16 %v344
      %v396 = vunpack.c.l.b16 %v345
      %v397 = vunpack.c.l.b16 %v346
      %v398 = vunpack.c.l.b16 %v347
      %v399 = vunpack.c.l.b16 %v348
      %v400 = vunpack.c.l.b16 %v349
      %v401 = vunpack.c.l.b16 %v350
      %v402 = vunpack.c.l.b16 %v351
      %v403 = vunpack.c.l.b16 %v352
      %v404 = vunpack.c.l.b16 %v353
      %v405 = vunpack.c.l.b16 %v354
      %v406 = vunpack.c.l.b16 %v355
      %v407 = vunpack.c.l.b16 %v356
      %v408 = vpack.c.b16 %v393, %v392
      %v409 = vpack.c.b16 %v395, %v394
      %v410 = vpack.c.b16 %v397, %v396
      %v411 = vpack.c.b16 %v399, %v398
      %v412 = vpack.c.b16 %v401, %v400
      %v413 = vpack.c.b16 %v403, %v402
      %v414 = vpack.c.b16 %v405, %v404
      %v415 = vpack.c.b16 %v407, %v406
      %424 = vmatprep.subr.bf16.mxu0 0
      %425 = vmatpush1.bf16.msra.mxu0 %v408
      %426 = vmatprep.subr.bf16.mxu0 0
      %427 = vmatpush1.bf16.msra.mxu0 %v409
      %428 = vmatprep.subr.bf16.mxu0 0
      %429 = vmatpush1.bf16.msra.mxu0 %v410
      %430 = vmatprep.subr.bf16.mxu0 0
      %431 = vmatpush1.bf16.msra.mxu0 %v411
      %432 = vmatprep.subr.bf16.mxu0 0
      %433 = vmatpush1.bf16.msra.mxu0 %v412
      %434 = vmatprep.subr.bf16.mxu0 0
      %435 = vmatpush1.bf16.msra.mxu0 %v413
      %436 = vmatprep.subr.bf16.mxu0 0
      %437 = vmatpush1.bf16.msra.mxu0 %v414
      %438 = vmatprep.subr.bf16.mxu0 0
      %439 = vmatpush1.bf16.msra.mxu0 %v415
      %440 = vmatprep.subr.bf16.mxu0 0
      %441 = vmatpush1.bf16.msra.mxu0 0
      %442 = vmatprep.subr.bf16.mxu0 0
      %443 = vmatpush1.bf16.msra.mxu0 0
      %444 = vmatprep.subr.bf16.mxu0 0
      %445 = vmatpush1.bf16.msra.mxu0 0
      %446 = vmatprep.subr.bf16.mxu0 0
      %447 = vmatpush1.bf16.msra.mxu0 0
      %448 = vmatprep.subr.bf16.mxu0 0
      %449 = vmatpush1.bf16.msra.mxu0 0
      %450 = vmatprep.subr.bf16.mxu0 0
      %451 = vmatpush1.bf16.msra.mxu0 0
      %452 = vmatprep.subr.bf16.mxu0 0
      %453 = vmatpush1.bf16.msra.mxu0 0
      %454 = vmatprep.subr.bf16.mxu0 0
      %455 = vmatpush1.bf16.msra.mxu0 0
      %456 = vmatprep.mubr.bf16.mxu0 0
      %457 = vmatmul.mubr.bf16.gmra.mrb[0].mxu0 %v372
      %v458 = vpop.f32.mrb[0].mxu0
      %v459 = vadd.f32 %v362, %v458
      %v460 = vpop.f32.mrb[0].mxu0
      %v461 = vpop.f32.mrb[0].mxu0
      %v462 = vadd.f32 %v362, %v461
      %v463 = vpop.f32.mrb[0].mxu0
      %464 = vmatprep.mubr.bf16.mxu0 0
      %465 = vmatmul.mubr.bf16.gmra.mrb[0].mxu0 %v373
      %v466 = vpop.f32.mrb[0].mxu0
      %v467 = vadd.f32 %v362, %v466
      %v468 = vpop.f32.mrb[0].mxu0
      %v469 = vpop.f32.mrb[0].mxu0
      %v470 = vadd.f32 %v362, %v469
      %v471 = vpop.f32.mrb[0].mxu0
      %472 = vdwg.mxu0
      %v473 = vmax.f32 %v459, 0.0
      %v474 = vmax.f32 %v462, 0.0
      %v475 = vmax.f32 %v467, 0.0
      %v476 = vmax.f32 %v470, 0.0
      %v477 = vpack.c.bf16 %v474, %v473
      %v478 = vpack.c.bf16 %v476, %v475
      %v479 = vld [vmem:[%s3] sm:$0xf]
      %v480 = vld [vmem:[%s3 + $0x4] sm:$0xf]
      %v481 = vld [vmem:[%s3 + $0x8] sm:$0xf]
      %v482 = vld [vmem:[%s3 + $0xc] sm:$0xf]
      %v483 = vld [vmem:[%s3 + $0x10] sm:$0xf]
      %v484 = vld [vmem:[%s3 + $0x14] sm:$0xf]
      %v485 = vld [vmem:[%s3 + $0x18] sm:$0xf]
      %v486 = vld [vmem:[%s3 + $0x1c] sm:$0xf]
      %v487 = vld [vmem:[%s3 + $0x20] sm:$0xf]
      %v488 = vld [vmem:[%s3 + $0x24] sm:$0xf]
      %v489 = vld [vmem:[%s3 + $0x28] sm:$0xf]
      %v490 = vld [vmem:[%s3 + $0x2c] sm:$0xf]
      %v491 = vld [vmem:[%s3 + $0x30] sm:$0xf]
      %v492 = vld [vmem:[%s3 + $0x34] sm:$0xf]
      %v493 = vld [vmem:[%s3 + $0x38] sm:$0xf]
      %v494 = vld [vmem:[%s3 + $0x3c] sm:$0xf]
      %v495 = vld [vmem:[%s4] sm:$0x1]
      %v497 = vlaneseq
      %v498 = vshrl.u32 %v497, 7
      %v499 = vsub.s32 0, %v498
      %v500 = vrot.slane %v495, %v499
      %v518 = vunpack.c.l.b16 %v479
      %v519 = vunpack.c.l.b16 %v480
      %v520 = vunpack.c.l.b16 %v481
      %v521 = vunpack.c.l.b16 %v482
      %v522 = vunpack.c.l.b16 %v483
      %v523 = vunpack.c.l.b16 %v484
      %v524 = vunpack.c.l.b16 %v485
      %v525 = vunpack.c.l.b16 %v486
      %v526 = vunpack.c.l.b16 %v487
      %v527 = vunpack.c.l.b16 %v488
      %v528 = vunpack.c.l.b16 %v489
      %v529 = vunpack.c.l.b16 %v490
      %v530 = vunpack.c.l.b16 %v491
      %v531 = vunpack.c.l.b16 %v492
      %v532 = vunpack.c.l.b16 %v493
      %v533 = vunpack.c.l.b16 %v494
      %v534 = vpack.c.b16 %v519, %v518
      %v535 = vpack.c.b16 %v521, %v520
      %v536 = vpack.c.b16 %v523, %v522
      %v537 = vpack.c.b16 %v525, %v524
      %v538 = vpack.c.b16 %v527, %v526
      %v539 = vpack.c.b16 %v529, %v528
      %v540 = vpack.c.b16 %v531, %v530
      %v541 = vpack.c.b16 %v533, %v532
      %550 = vmatprep.subr.bf16.mxu0 0
      %551 = vmatpush1.bf16.msra.mxu0 %v534
      %552 = vmatprep.subr.bf16.mxu0 0
      %553 = vmatpush1.bf16.msra.mxu0 %v535
      %554 = vmatprep.subr.bf16.mxu0 0
      %555 = vmatpush1.bf16.msra.mxu0 %v536
      %556 = vmatprep.subr.bf16.mxu0 0
      %557 = vmatpush1.bf16.msra.mxu0 %v537
      %558 = vmatprep.subr.bf16.mxu0 0
      %559 = vmatpush1.bf16.msra.mxu0 %v538
      %560 = vmatprep.subr.bf16.mxu0 0
      %561 = vmatpush1.bf16.msra.mxu0 %v539
      %562 = vmatprep.subr.bf16.mxu0 0
      %563 = vmatpush1.bf16.msra.mxu0 %v540
      %564 = vmatprep.subr.bf16.mxu0 0
      %565 = vmatpush1.bf16.msra.mxu0 %v541
      %566 = vmatprep.subr.bf16.mxu0 0
      %567 = vmatpush1.bf16.msra.mxu0 0
      %568 = vmatprep.subr.bf16.mxu0 0
      %569 = vmatpush1.bf16.msra.mxu0 0
      %570 = vmatprep.subr.bf16.mxu0 0
      %571 = vmatpush1.bf16.msra.mxu0 0
      %572 = vmatprep.subr.bf16.mxu0 0
      %573 = vmatpush1.bf16.msra.mxu0 0
      %574 = vmatprep.subr.bf16.mxu0 0
      %575 = vmatpush1.bf16.msra.mxu0 0
      %576 = vmatprep.subr.bf16.mxu0 0
      %577 = vmatpush1.bf16.msra.mxu0 0
      %578 = vmatprep.subr.bf16.mxu0 0
      %579 = vmatpush1.bf16.msra.mxu0 0
      %580 = vmatprep.subr.bf16.mxu0 0
      %581 = vmatpush1.bf16.msra.mxu0 0
      %582 = vmatprep.mubr.bf16.mxu0 0
      %583 = vmatmul.mubr.bf16.gmra.mrb[0].mxu0 %v477
      %v584 = vpop.f32.mrb[0].mxu0
      %v585 = vadd.f32 %v500, %v584
      %v586 = vpop.f32.mrb[0].mxu0
      %v587 = vpop.f32.mrb[0].mxu0
      %v588 = vadd.f32 %v500, %v587
      %v589 = vpop.f32.mrb[0].mxu0
      %590 = vmatprep.mubr.bf16.mxu0 0
      %591 = vmatmul.mubr.bf16.gmra.mrb[0].mxu0 %v478
      %v592 = vpop.f32.mrb[0].mxu0
      %v593 = vadd.f32 %v500, %v592
      %v594 = vpop.f32.mrb[0].mxu0
      %v595 = vpop.f32.mrb[0].mxu0
      %v596 = vadd.f32 %v500, %v595
      %v597 = vpop.f32.mrb[0].mxu0
      %598 = vdwg.mxu0
      %v599 = vmax.f32 %v585, 0.0
      %v600 = vmax.f32 %v588, 0.0
      %v601 = vmax.f32 %v593, 0.0
      %v602 = vmax.f32 %v596, 0.0
      %v603 = vpack.c.bf16 %v600, %v599
      %v604 = vpack.c.bf16 %v602, %v601
      %v605 = vld [vmem:[%s5] sm:$0xf]
      %v606 = vld [vmem:[%s5 + $0x4] sm:$0xf]
      %v607 = vld [vmem:[%s5 + $0x8] sm:$0xf]
      %v608 = vld [vmem:[%s5 + $0xc] sm:$0xf]
      %v609 = vld [vmem:[%s5 + $0x10] sm:$0xf]
      %v610 = vld [vmem:[%s5 + $0x14] sm:$0xf]
      %v611 = vld [vmem:[%s5 + $0x18] sm:$0xf]
      %v612 = vld [vmem:[%s5 + $0x1c] sm:$0xf]
      %v613 = vld [vmem:[%s6] sm:$0x1]
      %v615 = vlaneseq
      %v616 = vshrl.u32 %v615, 7
      %v617 = vsub.s32 0, %v616
      %v618 = vrot.slane %v613, %v617
      %v628 = vunpack.c.l.b16 %v605
      %v629 = vunpack.c.l.b16 %v606
      %v630 = vunpack.c.l.b16 %v607
      %v631 = vunpack.c.l.b16 %v608
      %v632 = vunpack.c.l.b16 %v609
      %v633 = vunpack.c.l.b16 %v610
      %v634 = vunpack.c.l.b16 %v611
      %v635 = vunpack.c.l.b16 %v612
      %v636 = vpack.c.b16 %v629, %v628
      %v637 = vpack.c.b16 %v631, %v630
      %v638 = vpack.c.b16 %v633, %v632
      %v639 = vpack.c.b16 %v635, %v634
      %vm644 = vcmask 523264
      %v646 = vsel %vm644, %v603, 0
      %v649 = vsel %vm644, %v604, 0
      %651 = vmatprep.subr.bf16.mxu0 0
      %652 = vmatpush1.bf16.msra.mxu0 %v636
      %653 = vmatprep.subr.bf16.mxu0 0
      %654 = vmatpush1.bf16.msra.mxu0 %v637
      %655 = vmatprep.subr.bf16.mxu0 0
      %656 = vmatpush1.bf16.msra.mxu0 %v638
      %657 = vmatprep.subr.bf16.mxu0 0
      %658 = vmatpush1.bf16.msra.mxu0 %v639
      %659 = vmatprep.subr.bf16.mxu0 0
      %660 = vmatpush1.bf16.msra.mxu0 0
      %661 = vmatprep.subr.bf16.mxu0 0
      %662 = vmatpush1.bf16.msra.mxu0 0
      %663 = vmatprep.subr.bf16.mxu0 0
      %664 = vmatpush1.bf16.msra.mxu0 0
      %665 = vmatprep.subr.bf16.mxu0 0
      %666 = vmatpush1.bf16.msra.mxu0 0
      %667 = vmatprep.subr.bf16.mxu0 0
      %668 = vmatpush1.bf16.msra.mxu0 0
      %669 = vmatprep.subr.bf16.mxu0 0
      %670 = vmatpush1.bf16.msra.mxu0 0
      %671 = vmatprep.subr.bf16.mxu0 0
      %672 = vmatpush1.bf16.msra.mxu0 0
      %673 = vmatprep.subr.bf16.mxu0 0
      %674 = vmatpush1.bf16.msra.mxu0 0
      %675 = vmatprep.subr.bf16.mxu0 0
      %676 = vmatpush1.bf16.msra.mxu0 0
      %677 = vmatprep.subr.bf16.mxu0 0
      %678 = vmatpush1.bf16.msra.mxu0 0
      %679 = vmatprep.subr.bf16.mxu0 0
      %680 = vmatpush1.bf16.msra.mxu0 0
      %681 = vmatprep.subr.bf16.mxu0 0
      %682 = vmatpush1.bf16.msra.mxu0 0
      %683 = vmatprep.mubr.bf16.mxu0 0
      %684 = vmatmul.mubr.bf16.gmra.mrb[0].mxu0 %v646
      %v685 = vpop.f32.mrb[0].mxu0
      %v686 = vadd.f32 %v618, %v685
      %v687 = vpop.f32.mrb[0].mxu0
      %v688 = vpop.f32.mrb[0].mxu0
      %v689 = vadd.f32 %v618, %v688
      %v690 = vpop.f32.mrb[0].mxu0
      %691 = vmatprep.mubr.bf16.mxu0 0
      %692 = vmatmul.mubr.bf16.gmra.mrb[0].mxu0 %v649
      %v693 = vpop.f32.mrb[0].mxu0
      %v694 = vadd.f32 %v618, %v693
      %v695 = vpop.f32.mrb[0].mxu0
      %v696 = vpop.f32.mrb[0].mxu0
      %v697 = vadd.f32 %v618, %v696
      %v698 = vpop.f32.mrb[0].mxu0
      %699 = vdwg.mxu0
      %v700 = vmax.f32 %v686, 0.0
      %v701 = vmax.f32 %v689, 0.0
      %v702 = vmax.f32 %v694, 0.0
      %v703 = vmax.f32 %v697, 0.0
      %v704 = vpack.c.bf16 %v701, %v700
      %v705 = vpack.c.bf16 %v703, %v702
      %v706 = vld [vmem:[%s7] sm:$0xf]
      %v707 = vld [vmem:[%s7 + $0x4] sm:$0xf]
      %v708 = vld [vmem:[%s7 + $0x8] sm:$0xf]
      %v709 = vld [vmem:[%s7 + $0xc] sm:$0xf]
      %v710 = vld [vmem:[%s8] sm:$0x1]
      %v712 = vlaneseq
      %v713 = vshrl.u32 %v712, 7
      %v714 = vsub.s32 0, %v713
      %v715 = vrot.slane %v710, %v714
      %v721 = vunpack.c.l.b16 %v706
      %v722 = vunpack.c.l.b16 %v707
      %v723 = vunpack.c.l.b16 %v708
      %v724 = vunpack.c.l.b16 %v709
      %v725 = vpack.c.b16 %v722, %v721
      %v726 = vpack.c.b16 %v724, %v723
      %vm729 = vcmask 261120
      %v731 = vsel %vm729, %v704, 0
      %v734 = vsel %vm729, %v705, 0
      %736 = vmatprep.subr.bf16.mxu0 0
      %737 = vmatpush1.bf16.msra.mxu0 %v725
      %738 = vmatprep.subr.bf16.mxu0 0
      %739 = vmatpush1.bf16.msra.mxu0 %v726
      %740 = vmatprep.subr.bf16.mxu0 0
      %741 = vmatpush1.bf16.msra.mxu0 0
      %742 = vmatprep.subr.bf16.mxu0 0
      %743 = vmatpush1.bf16.msra.mxu0 0
      %744 = vmatprep.subr.bf16.mxu0 0
      %745 = vmatpush1.bf16.msra.mxu0 0
      %746 = vmatprep.subr.bf16.mxu0 0
      %747 = vmatpush1.bf16.msra.mxu0 0
      %748 = vmatprep.subr.bf16.mxu0 0
      %749 = vmatpush1.bf16.msra.mxu0 0
      %750 = vmatprep.subr.bf16.mxu0 0
      %751 = vmatpush1.bf16.msra.mxu0 0
      %752 = vmatprep.subr.bf16.mxu0 0
      %753 = vmatpush1.bf16.msra.mxu0 0
      %754 = vmatprep.subr.bf16.mxu0 0
      %755 = vmatpush1.bf16.msra.mxu0 0
      %756 = vmatprep.subr.bf16.mxu0 0
      %757 = vmatpush1.bf16.msra.mxu0 0
      %758 = vmatprep.subr.bf16.mxu0 0
      %759 = vmatpush1.bf16.msra.mxu0 0
      %760 = vmatprep.subr.bf16.mxu0 0
      %761 = vmatpush1.bf16.msra.mxu0 0
      %762 = vmatprep.subr.bf16.mxu0 0
      %763 = vmatpush1.bf16.msra.mxu0 0
      %764 = vmatprep.subr.bf16.mxu0 0
      %765 = vmatpush1.bf16.msra.mxu0 0
      %766 = vmatprep.subr.bf16.mxu0 0
      %767 = vmatpush1.bf16.msra.mxu0 0
      %768 = vmatprep.mubr.bf16.mxu0 0
      %769 = vmatmul.mubr.bf16.gmra.mrb[0].mxu0 %v731
      %v770 = vpop.f32.mrb[0].mxu0
      %v771 = vadd.f32 %v715, %v770
      %v772 = vpop.f32.mrb[0].mxu0
      %v773 = vpop.f32.mrb[0].mxu0
      %v774 = vadd.f32 %v715, %v773
      %v775 = vpop.f32.mrb[0].mxu0
      %776 = vmatprep.mubr.bf16.mxu0 0
      %777 = vmatmul.mubr.bf16.gmra.mrb[0].mxu0 %v734
      %v778 = vpop.f32.mrb[0].mxu0
      %v779 = vadd.f32 %v715, %v778
      %v780 = vpop.f32.mrb[0].mxu0
      %v781 = vpop.f32.mrb[0].mxu0
      %v782 = vadd.f32 %v715, %v781
      %v783 = vpop.f32.mrb[0].mxu0
      %784 = vdwg.mxu0
      %v785 = vtanh.pop %v771
      %v786 = vtanh.pop %v774
      %v787 = vtanh.pop %v779
      %v788 = vtanh.pop %v782
      %789 = vst [vmem:[%s334] sm:$0xff] %v785
      %790 = vst [vmem:[%s334 + $0x8] sm:$0xff] %v786
      %791 = vst [vmem:[%s334 + $0x10] sm:$0xff] %v787
      %792 = vst [vmem:[%s334 + $0x18] sm:$0xff] %v788
      %s793 = smul.u32 4, %s20
      %p794 = scmp.lt.s32.totalorder %s793, 7
      %s795 = scalar_select %p794, %s793, 7
      %s796 = smul.addr %s795, 8
      %s797 = scalar_lea.vmem %s9, %s796
      // Predicated region
      $region57: #{actor_forward.1} parent=55 // pred_check
        %p798 = pneg %p232
      $region58: #{actor_forward.1} parent=55 // pred_check_branch
        %800 = sbr.rel (%p798) target = $region60
      $region59: #{actor_forward.1} parent=55 // pred_region
        %s801 = smul.u32 4, %s20
      $region60: #{actor_forward.1} parent=55 // pred_fallthru
        _
    $region56: #{actor_forward.1} parent=5 // pred_fallthru
      _
    %p802 = scmp.le.s32.totalorder 2, %s15
    // Predicated region
    $region61: #{actor_forward.1} parent=5 // pred_check
      %p803 = pneg %p802
    $region62: #{actor_forward.1} parent=5 // pred_check_branch
      %805 = sbr.rel (%p803) target = $region64
    $region63: #{actor_forward.1} parent=5 // pred_region
      %s806 = ssub.s32 %s15, 2
      // Predicated region
      $region65: #{actor_forward.1} parent=63 // pred_check
        %p807 = pneg %p238
      $region66: #{actor_forward.1} parent=63 // pred_check_branch
        %809 = sbr.rel (%p807) target = $region68
      $region67: #{actor_forward.1} parent=63 // pred_region
        %s810 = smul.u32 4, %s21
        %p811 = scmp.lt.s32.totalorder %s810, 7
        %s812 = scalar_select %p811, %s810, 7
        %s813 = smul.addr %s812, 8
        %s814 = scalar_lea.vmem %s9, %s813
      $region68: #{actor_forward.1} parent=63 // pred_fallthru
        _
    $region64: #{actor_forward.1} parent=5 // pred_fallthru
      _
  $region6: #{actor_forward.1} parent=0 // loop_footer
    %s19 = sadd.s32 1, %s15
  $region7: #{actor_forward.1} parent=0 // loop_footer_branch
    %14 = sbr.rel target = $region3
  $region8: #{actor_forward.1} parent=0 // loop_exit
    _

</llo_original>
